<compile_context>
chip_gen: v6e
topology: v6e:2x2x1
jax: 0.10.0
libtpu: 0.0.40
codegen_flags: <defaults>
</compile_context>

<pallas_src>
import functools
import math

import jax
import jax.numpy as jnp
from jax import lax
from jax.experimental import pallas as pl
from jax.experimental.pallas import tpu as pltpu


_MAX_QUERY_CHUNK = 512          # query-row tile for attention-1
_STATIC_UNROLL_CHUNKS = 8       # unroll the chunk loop statically up to this
_LANE = 128                     # TPU lane width  (last dim)
_SUBLANE = 8                    # TPU sublane width (2nd-to-last dim)
_NEG_INF = -1e9                 # same magnitude the PyTorch masked_fill uses


def _round_up(n, m):
    return ((n + m - 1) // m) * m


def _softmax_last(s, approx):
    """Numerically stable softmax over the last axis; `s` is f32."""
    m = jnp.max(s, axis=-1, keepdims=True)
    e = jnp.exp(s - m)
    denom = jnp.sum(e, axis=-1, keepdims=True)
    if approx:
        # EUP reciprocal (separate issue slot, ~1e-3 rel err) — only used on
        # low-precision compute paths; the f32 path divides exactly.
        return e * pl.reciprocal(denom, approx=True)
    return e / denom


def _attn1_chunk(xq, x, start, *, s_real, sp, dp, inv_sqrt_d, cdt, approx):
    """One query-row chunk of attention-1.

    xq: (bt, tq, dp) query rows (compute dtype)
    x : (bt, sp, dp) keys / values (compute dtype)
    Returns the y chunk (bt, tq, dp) in f32, with padded-S rows zeroed so they
    cannot contaminate the attention-2 Gram.
    """
    f32 = jnp.float32
    if sp <= dp:
        # Scaling the (tq, sp) scores is cheaper than scaling the (tq, dp) queries.
        s1 = jnp.einsum("bqd,bkd->bqk", xq, x, preferred_element_type=f32)
        s1 = s1 * inv_sqrt_d
    else:
        xq = (xq * inv_sqrt_d).astype(cdt)
        s1 = jnp.einsum("bqd,bkd->bqk", xq, x, preferred_element_type=f32)
    if s_real < sp:                      # mask padded key columns
        kpos = lax.broadcasted_iota(jnp.int32, (1, 1, sp), 2)
        s1 = jnp.where(kpos < s_real, s1, _NEG_INF)
    p1 = _softmax_last(s1, approx).astype(cdt)                 # (bt, tq, sp)
    y_c = jnp.einsum("bqk,bkd->bqd", p1, x, preferred_element_type=f32)
    if s_real < sp:                      # zero padded query rows of y
        tq = y_c.shape[1]
        row = start + lax.broadcasted_iota(jnp.int32, (1, tq, 1), 1)
        y_c = jnp.where(row < s_real, y_c, 0.0)
    return y_c


def _self_transformer3_kernel(x_ref, o_ref, *scratch, s_real, d_real, tq,
                              compute_dtype):
    f32 = jnp.float32
    cdt = compute_dtype
    approx = cdt != jnp.dtype(jnp.float32)
    bt, sp, dp = x_ref.shape
    inv_sqrt_d = 1.0 / math.sqrt(d_real)
    inv_sqrt_s = 1.0 / math.sqrt(s_real)

    x = x_ref[...].astype(cdt)           # keys & values for attention-1

    chunk = functools.partial(_attn1_chunk, s_real=s_real, sp=sp, dp=dp,
                              inv_sqrt_d=inv_sqrt_d, cdt=cdt, approx=approx)

    # --- attention 1: query-row tiled, y accumulated in VMEM scratch --------
    if not scratch:
        # Single query chunk: keep y live, no VMEM round-trip and no scratch.
        y = chunk(x, x, 0).astype(cdt)
    else:
        (y_ref,) = scratch
        num_chunks = sp // tq

        def do_chunk(start):
            xq = x_ref[:, pl.ds(start, tq), :].astype(cdt)
            y_ref[:, pl.ds(start, tq), :] = chunk(xq, x, start).astype(cdt)

        if num_chunks <= _STATIC_UNROLL_CHUNKS:
            for c in range(num_chunks):          # fully static slices
                do_chunk(c * tq)
        else:
            @pl.loop(0, num_chunks)
            def _(c):
                do_chunk(pl.multiple_of(c * tq, tq))

        y = y_ref[...]                   # (bt, sp, dp) compute dtype

    # --- attention 2: Gram over the seq axis, no explicit transpose ---------
    if dp <= sp:
        s2 = jnp.einsum("bsd,bsf->bdf", y, y, preferred_element_type=f32)
        s2 = s2 * inv_sqrt_s
    else:
        ys = (y * inv_sqrt_s).astype(cdt)
        s2 = jnp.einsum("bsd,bsf->bdf", y, ys, preferred_element_type=f32)
    if d_real < dp:                      # mask padded key columns
        fpos = lax.broadcasted_iota(jnp.int32, (1, 1, dp), 2)
        s2 = jnp.where(fpos < d_real, s2, _NEG_INF)
    p2 = _softmax_last(s2, approx).astype(cdt)                 # (bt, dp, dp)

    # out = (p2 @ y^T)^T == y @ p2^T  -> lane-dense store, no z / z^T built.
    out = jnp.einsum("bsk,bdk->bsd", y, p2, preferred_element_type=f32)
    o_ref[...] = out.astype(o_ref.dtype)


def _working_set_bytes(bt, sp, dp, tq, in_itemsize, c_itemsize):
    """Per-grid-step VMEM footprint estimate (1.4x safety for compiler temps)."""
    io = 2 * 2 * sp * dp * in_itemsize                        # double-buffered in + out
    persist = 2 * sp * dp * c_itemsize                        # compute-dtype x + y
    attn1 = tq * sp * (2 * 4 + c_itemsize) + tq * dp * 4      # s1 + exp (f32), p1, y chunk
    attn2 = dp * dp * (2 * 4 + c_itemsize) + sp * dp * 4      # s2 + exp (f32), p2, f32 out
    return int(1.4 * bt * (io + persist + attn1 + attn2))


def _physical_vmem_bytes():
    try:
        cap = getattr(pltpu.get_tpu_info(), "vmem_capacity_bytes", None)
        if cap:
            return int(cap)
    except Exception:
        pass
    return 64 * 1024 * 1024              # conservative (v7x per-TensorCore)


def _pick_query_chunk(sp):
    if sp <= _MAX_QUERY_CHUNK:
        return sp
    for t in range(_MAX_QUERY_CHUNK, _SUBLANE - 1, -_SUBLANE):
        if sp % t == 0:
            return t
    return sp                            # unreachable: sp is a multiple of 8


def self_transformer3(x, *, compute_dtype=None, batch_tile=None,
                      query_chunk=None):
    """x: (B, S, D) -> (B, S, D). Pallas TPU implementation of self_transformer3."""
    B, S, D = x.shape
    in_dtype = jnp.dtype(x.dtype)
    cdt = jnp.dtype(compute_dtype) if compute_dtype is not None else in_dtype

    # Lane/sublane-friendly padded shapes (padding is masked inside the kernel).
    sp = _round_up(S, _SUBLANE)
    dp = _round_up(D, _LANE)

    tq = _pick_query_chunk(sp) if query_chunk is None else int(query_chunk)
    assert sp % tq == 0 and tq % _SUBLANE == 0, (sp, tq)

    xi = in_dtype.itemsize
    ci = cdt.itemsize
    phys_vmem = _physical_vmem_bytes()

    if batch_tile is None:
        budget = int(0.45 * phys_vmem)              # generation-aware tile budget
        per_b = max(_working_set_bytes(1, sp, dp, tq, xi, ci), 1)
        bt = max(1, min(B, budget // per_b))
        if B >= 2:                                  # keep >= 2 grid steps so the
            bt = min(bt, -(-B // 2))                # parallel axis feeds both v7x TCs
    else:
        bt = int(batch_tile)
    bt = max(1, bt)
    b_pad = _round_up(B, bt)                        # non-divisor B handled by padding
    grid_steps = b_pad // bt

    need = _working_set_bytes(bt, sp, dp, tq, xi, ci)
    vmem_ceiling = int(0.78 * phys_vmem)            # leave Mosaic scratch headroom
    vmem_limit = int(min(max(need + need // 4, 32 * 1024 * 1024), vmem_ceiling))

    xp = x
    if (b_pad, sp, dp) != (B, S, D):
        xp = jnp.pad(x, ((0, b_pad - B), (0, sp - S), (0, dp - D)))

    num_chunks = sp // tq
    scratch_shapes = [] if num_chunks == 1 else [pltpu.VMEM((bt, sp, dp), cdt)]

    kernel = functools.partial(_self_transformer3_kernel, s_real=S, d_real=D,
                               tq=tq, compute_dtype=cdt)

    cost = pl.CostEstimate(
        flops=int(B * (4 * S * S * D + 4 * S * D * D)),
        transcendentals=int(B * (S * S + D * D)),
        bytes_accessed=int(2 * B * S * D * xi),
    )

    out = pl.pallas_call(
        kernel,
        out_shape=jax.ShapeDtypeStruct((b_pad, sp, dp), in_dtype),
        grid_spec=pltpu.PrefetchScalarGridSpec(
            num_scalar_prefetch=0,
            grid=(grid_steps,),
            in_specs=[pl.BlockSpec((bt, sp, dp), lambda b: (b, 0, 0))],
            out_specs=pl.BlockSpec((bt, sp, dp), lambda b: (b, 0, 0)),
            scratch_shapes=scratch_shapes,
        ),
        compiler_params=pltpu.CompilerParams(
            dimension_semantics=("parallel",),
            vmem_limit_bytes=vmem_limit,
        ),
        cost_estimate=cost,
    )(xp)

    if (b_pad, sp, dp) != (B, S, D):
        out = out[:B, :S, :D]
    return out


def _reference(x):
    """Pure-JAX reference mirroring the PyTorch forward (f32)."""
    def attn(q):
        d_k = q.shape[-1]
        scores = jnp.einsum("bij,bkj->bik", q, q) / math.sqrt(d_k)
        p = jax.nn.softmax(scores, axis=-1)
        return jnp.einsum("bik,bkd->bid", p, q)

    y = attn(x)
    yt = jnp.swapaxes(y, -2, -1)
    z = attn(yt)
    return jnp.swapaxes(z, -2, -1)


# TODO(synk): the PyTorch module also stashes p_attn in self.attn1/self.attn2;
# those attention maps are not returned by this kernel.

if __name__ == "__main__":
    root = jax.random.PRNGKey(0)
    k1, k2, k3, k4 = jax.random.split(root, 4)

    def run_case(name, key, shape, tol, **kwargs):
        x = jax.random.normal(key, shape, dtype=jnp.float32)
        out = jax.block_until_ready(self_transformer3(x, **kwargs))
        ref = _reference(x)
        assert out.shape == x.shape, (name, out.shape)
        err = float(jnp.max(jnp.abs(out.astype(jnp.float32) - ref)))
        assert jnp.allclose(out.astype(jnp.float32), ref,
                            atol=tol, rtol=tol), (name, err)

    # Canonical small shape (B, S, D) = (2, 8, 32): D padded to 128 lanes,
    # two grid steps (one batch element per step -> megacore-friendly).
    run_case("base", k1, (2, 8, 32), tol=2e-2)

    # Unaligned everything: B=3 (padded to 4), S=10 -> 16, D=20 -> 128;
    # exercises the key masking and padded-row zeroing paths.
    run_case("unaligned", k2, (3, 10, 20), tol=2e-2)

    # Larger S: exercises the query-chunked (flash-style) attention-1 loop.
    run_case("chunked", k3, (1, 1024, 32), tol=3e-2)

    # Opt-in bf16 compute path for f32 inputs (MXU-native on v6e/v7x).
    run_case("bf16_compute", k4, (2, 8, 32), tol=2.5e-1,
             compute_dtype=jnp.bfloat16)

    print("KERNEL_OK")
</pallas_src>

<mosaic_0001>
module attributes {stable_mosaic.version = 11 : i64} {
  func.func @_self_transformer3_kernel(%arg0: i32, %arg1: memref<1x8x128xf32, #tpu.memory_space<vmem>>, %arg2: memref<1x8x128xf32, #tpu.memory_space<vmem>>) attributes {dimension_semantics = [#tpu.dimension_semantics<parallel>], iteration_bounds = array<i64: 2>, scalar_prefetch = 0 : i64, scratch_operands = 0 : i64, tpu.core_type = #tpu.core_type<tc>, window_params = [{transform_indices = @transform_0, window_bounds = array<i64: 1, 8, 128>}, {transform_indices = @transform_1, window_bounds = array<i64: 1, 8, 128>}]} {
    %c0 = arith.constant 0 : index
    %c0_0 = arith.constant 0 : index
    %c0_1 = arith.constant 0 : index
    %0 = vector.load %arg1[%c0, %c0_0, %c0_1] : memref<1x8x128xf32, #tpu.memory_space<vmem>>, vector<1x8x128xf32>
    "tpu.trace_start"() <{level = 10 : i32, message = "bqd,bkd->bqk"}> : () -> ()
    %cst = arith.constant dense<0.000000e+00> : vector<1x8x8xf32>
    %1 = tpu.matmul %0, %0, %cst {dimension_numbers = #tpu.dot_dimension_numbers<[2], [2], [1], [1], [0, 0, 0, 1, 1, 1], [0], [0]>} : vector<1x8x128xf32>, vector<1x8x128xf32>, vector<1x8x8xf32> -> vector<1x8x8xf32>
    "tpu.trace_stop"() : () -> ()
    %cst_2 = arith.constant 0.176776692 : f32
    %2 = vector.broadcast %cst_2 : f32 to vector<1x8x8xf32>
    %3 = arith.mulf %1, %2 : vector<1x8x8xf32>
    %cst_3 = arith.constant dense<0xFF800000> : vector<1x8xf32>
    %4 = vector.multi_reduction <maximumf>, %3, %cst_3 [2] : vector<1x8x8xf32> to vector<1x8xf32>
    %5 = vector.shape_cast %4 : vector<1x8xf32> to vector<1x8x1xf32>
    %6 = vector.broadcast %5 : vector<1x8x1xf32> to vector<1x8x8xf32>
    %7 = arith.subf %3, %6 : vector<1x8x8xf32>
    %8 = math.exp %7 : vector<1x8x8xf32>
    %cst_4 = arith.constant dense<0.000000e+00> : vector<1x8xf32>
    %9 = vector.multi_reduction <add>, %8, %cst_4 [2] : vector<1x8x8xf32> to vector<1x8xf32>
    %10 = vector.shape_cast %9 : vector<1x8xf32> to vector<1x8x1xf32>
    %11 = vector.broadcast %10 : vector<1x8x1xf32> to vector<1x8x8xf32>
    %12 = arith.divf %8, %11 : vector<1x8x8xf32>
    "tpu.trace_start"() <{level = 10 : i32, message = "bqk,bkd->bqd"}> : () -> ()
    %cst_5 = arith.constant dense<0.000000e+00> : vector<1x8x128xf32>
    %13 = tpu.matmul %12, %0, %cst_5 {dimension_numbers = #tpu.dot_dimension_numbers<[2], [1], [1], [2], [0, 0, 0, 1, 1, 2], [0], [0]>} : vector<1x8x8xf32>, vector<1x8x128xf32>, vector<1x8x128xf32> -> vector<1x8x128xf32>
    "tpu.trace_stop"() : () -> ()
    %cst_6 = arith.constant 0.353553385 : f32
    %14 = vector.broadcast %cst_6 : f32 to vector<1x8x128xf32>
    %15 = arith.mulf %13, %14 : vector<1x8x128xf32>
    "tpu.trace_start"() <{level = 10 : i32, message = "bsd,bsf->bdf"}> : () -> ()
    %cst_7 = arith.constant dense<0.000000e+00> : vector<1x128x128xf32>
    %16 = tpu.matmul %13, %15, %cst_7 {dimension_numbers = #tpu.dot_dimension_numbers<[1], [1], [2], [2], [0, 0, 0, 2, 1, 2], [0], [0]>} : vector<1x8x128xf32>, vector<1x8x128xf32>, vector<1x128x128xf32> -> vector<1x128x128xf32>
    "tpu.trace_stop"() : () -> ()
    %17 = tpu.iota {dimensions = array<i32: 2>} : vector<1x1x128xi32>
    %c32_i32 = arith.constant 32 : i32
    %18 = vector.broadcast %c32_i32 : i32 to vector<1x1x128xi32>
    %19 = arith.cmpi slt, %17, %18 : vector<1x1x128xi32>
    %cst_8 = arith.constant -1.000000e+09 : f32
    %20 = vector.shape_cast %19 : vector<1x1x128xi1> to vector<1x1x128xi1>
    %21 = vector.broadcast %20 : vector<1x1x128xi1> to vector<1x128x128xi1>
    %22 = vector.broadcast %cst_8 : f32 to vector<1x128x128xf32>
    %23 = arith.select %21, %16, %22 : vector<1x128x128xi1>, vector<1x128x128xf32>
    %cst_9 = arith.constant dense<0xFF800000> : vector<1x128xf32>
    %24 = vector.multi_reduction <maximumf>, %23, %cst_9 [2] : vector<1x128x128xf32> to vector<1x128xf32>
    %25 = vector.shape_cast %24 : vector<1x128xf32> to vector<1x128x1xf32>
    %26 = vector.broadcast %25 : vector<1x128x1xf32> to vector<1x128x128xf32>
    %27 = arith.subf %23, %26 : vector<1x128x128xf32>
    %28 = math.exp %27 : vector<1x128x128xf32>
    %cst_10 = arith.constant dense<0.000000e+00> : vector<1x128xf32>
    %29 = vector.multi_reduction <add>, %28, %cst_10 [2] : vector<1x128x128xf32> to vector<1x128xf32>
    %30 = vector.shape_cast %29 : vector<1x128xf32> to vector<1x128x1xf32>
    %31 = vector.broadcast %30 : vector<1x128x1xf32> to vector<1x128x128xf32>
    %32 = arith.divf %28, %31 : vector<1x128x128xf32>
    "tpu.trace_start"() <{level = 10 : i32, message = "bsk,bdk->bsd"}> : () -> ()
    %cst_11 = arith.constant dense<0.000000e+00> : vector<1x8x128xf32>
    %33 = tpu.matmul %13, %32, %cst_11 {dimension_numbers = #tpu.dot_dimension_numbers<[2], [2], [1], [1], [0, 0, 0, 1, 1, 1], [0], [0]>} : vector<1x8x128xf32>, vector<1x128x128xf32>, vector<1x8x128xf32> -> vector<1x8x128xf32>
    "tpu.trace_stop"() : () -> ()
    %c0_12 = arith.constant 0 : index
    %c0_13 = arith.constant 0 : index
    %c0_14 = arith.constant 0 : index
    %34 = vector.load %arg2[%c0_12, %c0_13, %c0_14] : memref<1x8x128xf32, #tpu.memory_space<vmem>>, vector<1x8x128xf32>
    tpu.vector_store %arg2[%c0_12, %c0_13, %c0_14], %33 {strides = array<i32>} : memref<1x8x128xf32, #tpu.memory_space<vmem>>, vector<1x8x128xf32>,
    return
  }
  func.func @transform_0(%arg0: i32) -> (i32, i32, i32) {
    %c0_i32 = arith.constant 0 : i32
    %c0_i32_0 = arith.constant 0 : i32
    %c0_i32_1 = arith.constant 0 : i32
    return %arg0, %c0_i32, %c0_i32_0 : i32, i32, i32
  }
  func.func @transform_1(%arg0: i32) -> (i32, i32, i32) {
    %c0_i32 = arith.constant 0 : i32
    %c0_i32_0 = arith.constant 0 : i32
    %c0_i32_1 = arith.constant 0 : i32
    return %arg0, %c0_i32, %c0_i32_0 : i32, i32, i32
  }
}

</mosaic_0001>

<llo_original>
// kernel: tpu_custom_call.1
$region0: #{tpu_custom_call.1}
  #allocation0 [shape = 'u32[]', space=smem, size = 0x4, offset = 0x4, fixed_abs, tag = 'smem constant byte address 0x4 - core index']
  #allocation1 [shape = 'u32[144,128]{1,0:T(1,128)}', space=vmem, size = 0x12000, scoped, tag = 'internal scratch']
  %s0 = inlined_call_operand.hbm [shape: f32[2,8,128], index: 0, kind: input, shape index: {}]
  %s1 = inlined_call_operand.hbm [shape: f32[2,8,128], index: 1, kind: output, shape index: {}]
  %s2 = sld [smem:[#allocation0]]
  $region41: #{tpu_custom_call.1} parent=0
    _
  %s4 = ssub.s32 1, %s2
  %s5 = scalar_select 0, %s4, %s2
  $region1: #{tpu_custom_call.1} parent=0
    #allocation2 [shape = 'u8[8192]{0}', space=vmem, size = 0x2000, scoped, tag = 'input window, operand 0']
    #allocation3 [shape = 's32[2]{0}', space=sflag, size = 0x8, scoped, tag = 'scoped memory for tpu_custom_call.1']
    #allocation4 [shape = 's32[2]{0}', space=sflag, size = 0x8, scoped, tag = 'scoped memory for tpu_custom_call.1']
    #allocation5 [shape = 'u8[8192]{0}', space=vmem, size = 0x2000, scoped, tag = 'output window, operand 0']
    %6 = vsyncpa [#allocation3], 0
    %s7 = scalar_lea.sflag [#allocation3], 1
    %8 = vsyncpa %s7, 0
    %9 = vsyncpa [#allocation4], 0
    %s10 = scalar_lea.sflag [#allocation4], 1
    %11 = vsyncpa %s10, 0
    loop: start=0, step=1, limit=4
    $region2: #{tpu_custom_call.1} parent=1 // loop_pre_header
      _
    $region3: #{tpu_custom_call.1} parent=1 // loop_header
      %s13 = sphi 0, %s17
      %p14 = scmp.ge.s32.totalorder %s13, 4
      %s23 = sphi 0, %s25
      %s26 = sphi 0, %s23
      %s27 = sphi 0, %s26
      %s43 = sphi 0, %s27
      %s49 = sphi 0, %s51
      %s52 = sphi 0, %s49
      %s53 = sphi 0, %s52
      %s69 = sphi 0, %s53
    $region4: #{tpu_custom_call.1} parent=1 // loop_header_branch
      %16 = sbr.rel (%p14) target = $region8
    $region5: #{tpu_custom_call.1} parent=1 // loop_body
      %s18 = ssub.s32 %s13, 1
      %s19 = ssub.s32 %s13, 2
      %s20 = sadd.s32 %s13, 1
      %s21 = ssub.s32 %s13, %s20
      %p22 = scmp.eq.s32.totalorder %s21, 0
      %s24 = sadd.s32 %s23, 1
      %s25 = scalar_select %p22, %s23, %s24
      %p28 = pneg %p22
      %p29 = scmp.eq.s32.totalorder %s13, 1
      %p30 = por %p28, %p29
      %p31 = scmp.ne.s32.totalorder %s23, %s26
      %p32 = scmp.eq.s32.totalorder %s13, 0
      %p33 = por %p31, %p32
      %p34 = scmp.ne.s32.totalorder %s23, %s26
      %p35 = scmp.eq.s32.totalorder %s18, 1
      %p36 = por %p34, %p35
      %p37 = scmp.ne.s32.totalorder %s26, %s27
      %p38 = scmp.eq.s32.totalorder %s18, 0
      %p39 = por %p37, %p38
      %p40 = scmp.ne.s32.totalorder %s26, %s27
      %p41 = scmp.eq.s32.totalorder %s19, 1
      %p42 = por %p40, %p41
      %p44 = scmp.ne.s32.totalorder %s27, %s43
      %p45 = scmp.eq.s32.totalorder %s19, 0
      %p46 = por %p44, %p45
      %s47 = ssub.s32 %s13, %s20
      %p48 = scmp.eq.s32.totalorder %s47, 0
      %s50 = sadd.s32 %s49, 1
      %s51 = scalar_select %p48, %s49, %s50
      %p54 = pneg %p48
      %p55 = scmp.eq.s32.totalorder %s13, 1
      %p56 = por %p54, %p55
      %p57 = scmp.ne.s32.totalorder %s49, %s52
      %p58 = scmp.eq.s32.totalorder %s13, 0
      %p59 = por %p57, %p58
      %p60 = scmp.ne.s32.totalorder %s49, %s52
      %p61 = scmp.eq.s32.totalorder %s18, 1
      %p62 = por %p60, %p61
      %p63 = scmp.ne.s32.totalorder %s52, %s53
      %p64 = scmp.eq.s32.totalorder %s18, 0
      %p65 = por %p63, %p64
      %p66 = scmp.ne.s32.totalorder %s52, %s53
      %p67 = scmp.eq.s32.totalorder %s19, 1
      %p68 = por %p66, %p67
      %p70 = scmp.ne.s32.totalorder %s53, %s69
      %p71 = scmp.eq.s32.totalorder %s19, 0
      %p72 = por %p70, %p71
      %p73 = scmp.le.s32.totalorder 1, %s13
      %p74 = scmp.lt.s32.totalorder %s13, 3
      %p75 = pnand %p73, %p74
      %p76 = pneg %p75
      // Predicated region
      $region9: #{tpu_custom_call.1} parent=5 // pred_check
        _
      $region10: #{tpu_custom_call.1} parent=5 // pred_check_branch
        %78 = sbr.rel (%p75) target = $region12
      $region11: #{tpu_custom_call.1} parent=5 // pred_region
        %s79 = ssub.s32 %s13, 1
      $region12: #{tpu_custom_call.1} parent=5 // pred_fallthru
        _
      %p80 = scmp.lt.s32.totalorder %s13, 2
      // Predicated region
      $region13: #{tpu_custom_call.1} parent=5 // pred_check
        %p81 = pneg %p80
      $region14: #{tpu_custom_call.1} parent=5 // pred_check_branch
        %83 = sbr.rel (%p81) target = $region16
      $region15: #{tpu_custom_call.1} parent=5 // pred_region
        // Predicated region
        $region17: #{tpu_custom_call.1} parent=15 // pred_check
          %p84 = pneg %p33
        $region18: #{tpu_custom_call.1} parent=15 // pred_check_branch
          %86 = sbr.rel (%p84) target = $region20
        $region19: #{tpu_custom_call.1} parent=15 // pred_region
          %s87 = sand.u32 %s23, 1
          %s88 = scalar_lea.sflag [#allocation3], %s87
          %s89 = sand.u32 %s23, 1
          %s90 = smul.addr %s89, 8
          %s91 = scalar_lea.vmem [#allocation2], %s90
          %s93 = ssub.s32 128, 128
          %94 = vsyncadd %s88, %s93
          %s95 = smul.addr %s13, 128
          %s96 = scalar_lea.hbm %s0, %s95
          %s98 = sshll.u32 %s91, 4
          %s99 = int_to_ptr.vmem [resolvable:$true] %s98
          %101 = dma.hbm_to_vmem [thread:$0]  %s96, 128, %s99, %s88
        $region20: #{tpu_custom_call.1} parent=15 // pred_fallthru
          _
      $region16: #{tpu_custom_call.1} parent=5 // pred_fallthru
        _
      %p102 = scmp.le.s32.totalorder 1, %s13
      %p103 = scmp.lt.s32.totalorder %s13, 3
      %p104 = pnand %p102, %p103
      %p105 = pneg %p104
      // Predicated region
      $region21: #{tpu_custom_call.1} parent=5 // pred_check
        _
      $region22: #{tpu_custom_call.1} parent=5 // pred_check_branch
        %107 = sbr.rel (%p104) target = $region24
      $region23: #{tpu_custom_call.1} parent=5 // pred_region
        %s108 = ssub.s32 %s13, 1
        %s109 = sand.u32 %s26, 1
        %s110 = scalar_lea.sflag [#allocation3], %s109
        %s111 = sand.u32 %s26, 1
        %s112 = smul.addr %s111, 8
        %s113 = scalar_lea.vmem [#allocation2], %s112
        // Predicated region
        $region25: #{tpu_custom_call.1} parent=23 // pred_check
          %p114 = pneg %p39
        $region26: #{tpu_custom_call.1} parent=23 // pred_check_branch
          %116 = sbr.rel (%p114) target = $region28
        $region27: #{tpu_custom_call.1} parent=23 // pred_region
          %117 = dma.done %s110, 128
        $region28: #{tpu_custom_call.1} parent=23 // pred_fallthru
          _
        %s118 = sand.u32 %s26, 1
        %s119 = scalar_lea.sflag [#allocation3], %s118
        %s120 = sand.u32 %s26, 1
        %s121 = smul.addr %s120, 8
        %s122 = scalar_lea.vmem [#allocation2], %s121
        %p123 = pneg %p39
        %p124 = pneg %p36
        %p125 = pneg %p65
        %p126 = pneg %p62
        %s127 = sand.u32 %s52, 1
        %s128 = scalar_lea.sflag [#allocation4], %s127
        %s129 = sand.u32 %s52, 1
        %s130 = smul.addr %s129, 8
        %s131 = scalar_lea.vmem [#allocation5], %s130
        %v132 = vld [vmem:[%s113] sm:$0xff]
        %133 = vmatprep.subr.mxu0 0.0
        %134 = vmatpush1.xpose.msra.mxu0 0.0
        %135 = vmatprep.subr.mxu0 0.0
        %136 = vmatpush1.xpose.msra.mxu0 0.0
        %137 = vmatprep.subr.mxu0 0.0
        %138 = vmatpush1.xpose.msra.mxu0 0.0
        %139 = vmatprep.subr.mxu0 0.0
        %140 = vmatpush1.xpose.msra.mxu0 0.0
        %141 = vmatprep.subr.mxu0 0.0
        %142 = vmatpush1.xpose.msra.mxu0 0.0
        %143 = vmatprep.subr.mxu0 0.0
        %144 = vmatpush1.xpose.msra.mxu0 0.0
        %145 = vmatprep.subr.mxu0 0.0
        %146 = vmatpush1.xpose.msra.mxu0 0.0
        %147 = vmatprep.subr.mxu0 0.0
        %148 = vmatpush1.xpose.msra.mxu0 0.0
        %149 = vmatprep.subr.mxu0 0.0
        %150 = vmatpush1.xpose.msra.mxu0 0.0
        %151 = vmatprep.subr.mxu0 0.0
        %152 = vmatpush1.xpose.msra.mxu0 0.0
        %153 = vmatprep.subr.mxu0 0.0
        %154 = vmatpush1.xpose.msra.mxu0 0.0
        %155 = vmatprep.subr.mxu0 0.0
        %156 = vmatpush1.xpose.msra.mxu0 0.0
        %157 = vmatprep.subr.mxu0 0.0
        %158 = vmatpush1.xpose.msra.mxu0 0.0
        %159 = vmatprep.subr.mxu0 0.0
        %160 = vmatpush1.xpose.msra.mxu0 0.0
        %161 = vmatprep.subr.mxu0 0.0
        %162 = vmatpush1.xpose.msra.mxu0 0.0
        %163 = vmatprep.subr.mxu0 0.0
        %164 = vmatpush1.xpose.msra.mxu0 %v132
        %165 = vmatprep.subr.mxu0 0.0
        %166 = vmatpush2.xpose.msra.mxu0 0.0
        %167 = vmatprep.subr.mxu0 0.0
        %168 = vmatpush2.xpose.msra.mxu0 0.0
        %169 = vmatprep.subr.mxu0 0.0
        %170 = vmatpush2.xpose.msra.mxu0 0.0
        %171 = vmatprep.subr.mxu0 0.0
        %172 = vmatpush2.xpose.msra.mxu0 0.0
        %173 = vmatprep.subr.mxu0 0.0
        %174 = vmatpush2.xpose.msra.mxu0 0.0
        %175 = vmatprep.subr.mxu0 0.0
        %176 = vmatpush2.xpose.msra.mxu0 0.0
        %177 = vmatprep.subr.mxu0 0.0
        %178 = vmatpush2.xpose.msra.mxu0 0.0
        %179 = vmatprep.subr.mxu0 0.0
        %180 = vmatpush2.xpose.msra.mxu0 0.0
        %181 = vmatprep.subr.mxu0 0.0
        %182 = vmatpush2.xpose.msra.mxu0 0.0
        %183 = vmatprep.subr.mxu0 0.0
        %184 = vmatpush2.xpose.msra.mxu0 0.0
        %185 = vmatprep.subr.mxu0 0.0
        %186 = vmatpush2.xpose.msra.mxu0 0.0
        %187 = vmatprep.subr.mxu0 0.0
        %188 = vmatpush2.xpose.msra.mxu0 0.0
        %189 = vmatprep.subr.mxu0 0.0
        %190 = vmatpush2.xpose.msra.mxu0 0.0
        %191 = vmatprep.subr.mxu0 0.0
        %192 = vmatpush2.xpose.msra.mxu0 0.0
        %193 = vmatprep.subr.mxu0 0.0
        %194 = vmatpush2.xpose.msra.mxu0 0.0
        %195 = vmatprep.subr.mxu0 0.0
        %196 = vmatpush2.xpose.msra.mxu0 0.0
        %197 = vmatprep.mubr.f32.mxu0 0.0
        %198 = vmatmul.mubr.f32.gmra.mxu0 %v132
        %v199 = vpop.f32.mrf.mxu0
        %v200 = vadd.f32 0.0, %v199
        %v201 = vpop.f32.mrf.mxu0
        %202 = vdwg.mxu0
        %v203 = vmul.f32 %v200, 0.17677669
        %vm204 = vcmask 64512
        %v205 = vsel %vm204, %v203, -inf
        %206 = vmax.xlane.f32.xlu0 %v205
        %v207 = vpop.xlane.xlu0 %206
        %v208 = vsub.f32 %v203, %v207
        %v209 = vmul.f32 %v208, 1.442695
        %v210 = vpow.pop %v209
        %v211 = vsel %vm204, %v210, 0.0
        %212 = vadd.xlane.f32.xlu0 %v211
        %v213 = vpop.xlane.xlu0 %212
        %v214 = vrcp.pop %v213
        %v215 = vmul.f32 %v210, %v214
        %v217 = vsel %vm204, %v215, 0
        %219 = vmatprep.subr.mxu0 0.0
        %220 = vmatpush1.msra.mxu0 0.0
        %221 = vmatprep.subr.mxu0 0.0
        %222 = vmatpush1.msra.mxu0 0.0
        %223 = vmatprep.subr.mxu0 0.0
        %224 = vmatpush1.msra.mxu0 0.0
        %225 = vmatprep.subr.mxu0 0.0
        %226 = vmatpush1.msra.mxu0 0.0
        %227 = vmatprep.subr.mxu0 0.0
        %228 = vmatpush1.msra.mxu0 0.0
        %229 = vmatprep.subr.mxu0 0.0
        %230 = vmatpush1.msra.mxu0 0.0
        %231 = vmatprep.subr.mxu0 0.0
        %232 = vmatpush1.msra.mxu0 0.0
        %233 = vmatprep.subr.mxu0 0.0
        %234 = vmatpush1.msra.mxu0 0.0
        %235 = vmatprep.subr.mxu0 0.0
        %236 = vmatpush1.msra.mxu0 0.0
        %237 = vmatprep.subr.mxu0 0.0
        %238 = vmatpush1.msra.mxu0 0.0
        %239 = vmatprep.subr.mxu0 0.0
        %240 = vmatpush1.msra.mxu0 0.0
        %241 = vmatprep.subr.mxu0 0.0
        %242 = vmatpush1.msra.mxu0 0.0
        %243 = vmatprep.subr.mxu0 0.0
        %244 = vmatpush1.msra.mxu0 0.0
        %245 = vmatprep.subr.mxu0 0.0
        %246 = vmatpush1.msra.mxu0 0.0
        %247 = vmatprep.subr.mxu0 0.0
        %248 = vmatpush1.msra.mxu0 0.0
        %249 = vmatprep.subr.mxu0 0.0
        %250 = vmatpush1.msra.mxu0 %v132
        %251 = vmatprep.subr.mxu0 0.0
        %252 = vmatpush2.msra.mxu0 0.0
        %253 = vmatprep.subr.mxu0 0.0
        %254 = vmatpush2.msra.mxu0 0.0
        %255 = vmatprep.subr.mxu0 0.0
        %256 = vmatpush2.msra.mxu0 0.0
        %257 = vmatprep.subr.mxu0 0.0
        %258 = vmatpush2.msra.mxu0 0.0
        %259 = vmatprep.subr.mxu0 0.0
        %260 = vmatpush2.msra.mxu0 0.0
        %261 = vmatprep.subr.mxu0 0.0
        %262 = vmatpush2.msra.mxu0 0.0
        %263 = vmatprep.subr.mxu0 0.0
        %264 = vmatpush2.msra.mxu0 0.0
        %265 = vmatprep.subr.mxu0 0.0
        %266 = vmatpush2.msra.mxu0 0.0
        %267 = vmatprep.subr.mxu0 0.0
        %268 = vmatpush2.msra.mxu0 0.0
        %269 = vmatprep.subr.mxu0 0.0
        %270 = vmatpush2.msra.mxu0 0.0
        %271 = vmatprep.subr.mxu0 0.0
        %272 = vmatpush2.msra.mxu0 0.0
        %273 = vmatprep.subr.mxu0 0.0
        %274 = vmatpush2.msra.mxu0 0.0
        %275 = vmatprep.subr.mxu0 0.0
        %276 = vmatpush2.msra.mxu0 0.0
        %277 = vmatprep.subr.mxu0 0.0
        %278 = vmatpush2.msra.mxu0 0.0
        %279 = vmatprep.subr.mxu0 0.0
        %280 = vmatpush2.msra.mxu0 0.0
        %281 = vmatprep.subr.mxu0 0.0
        %282 = vmatpush2.msra.mxu0 0.0
        %283 = vmatprep.mubr.f32.mxu0 0.0
        %284 = vmatmul.mubr.f32.gmra.mxu0 %v217
        %v285 = vpop.f32.mrf.mxu0
        %v286 = vadd.f32 0.0, %v285
        %v287 = vpop.f32.mrf.mxu0
        %288 = vdwg.mxu0
        %v289 = vmul.f32 %v286, 0.35355338
        %290 = vxpose.xlu0.b32.start [1/16] %v286, 128
        %291 = vxpose.xlu0.b32.cont [2/16] 0.0, 128
        %292 = vxpose.xlu0.b32.cont [3/16] 0.0, 128
        %293 = vxpose.xlu0.b32.cont [4/16] 0.0, 128
        %294 = vxpose.xlu0.b32.cont [5/16] 0.0, 128
        %295 = vxpose.xlu0.b32.cont [6/16] 0.0, 128
        %296 = vxpose.xlu0.b32.cont [7/16] 0.0, 128
        %297 = vxpose.xlu0.b32.cont [8/16] 0.0, 128
        %298 = vxpose.xlu0.b32.cont [9/16] 0.0, 128
        %299 = vxpose.xlu0.b32.cont [10/16] 0.0, 128
        %300 = vxpose.xlu0.b32.cont [11/16] 0.0, 128
        %301 = vxpose.xlu0.b32.cont [12/16] 0.0, 128
        %302 = vxpose.xlu0.b32.cont [13/16] 0.0, 128
        %303 = vxpose.xlu0.b32.cont [14/16] 0.0, 128
        %304 = vxpose.xlu0.b32.cont [15/16] 0.0, 128
        %305 = vxpose.xlu0.b32.end [16/16] 0.0, 128
        %v306 = vpop.trf.xlu0
        %v307 = vpop.trf.xlu0
        %v308 = vpop.trf.xlu0
        %v309 = vpop.trf.xlu0
        %v310 = vpop.trf.xlu0
        %v311 = vpop.trf.xlu0
        %v312 = vpop.trf.xlu0
        %v313 = vpop.trf.xlu0
        %v314 = vpop.trf.xlu0
        %v315 = vpop.trf.xlu0
        %v316 = vpop.trf.xlu0
        %v317 = vpop.trf.xlu0
        %v318 = vpop.trf.xlu0
        %v319 = vpop.trf.xlu0
        %v320 = vpop.trf.xlu0
        %v321 = vpop.trf.xlu0
        %v323 = vsel %vm204, %v306, 0
        %v326 = vsel %vm204, %v307, 0
        %v329 = vsel %vm204, %v308, 0
        %v332 = vsel %vm204, %v309, 0
        %v335 = vsel %vm204, %v310, 0
        %v338 = vsel %vm204, %v311, 0
        %v341 = vsel %vm204, %v312, 0
        %v344 = vsel %vm204, %v313, 0
        %v347 = vsel %vm204, %v314, 0
        %v350 = vsel %vm204, %v315, 0
        %v353 = vsel %vm204, %v316, 0
        %v356 = vsel %vm204, %v317, 0
        %v359 = vsel %vm204, %v318, 0
        %v362 = vsel %vm204, %v319, 0
        %v365 = vsel %vm204, %v320, 0
        %v368 = vsel %vm204, %v321, 0
        %370 = vmatprep.subr.mxu0 0.0
        %371 = vmatpush1.msra.mxu0 0.0
        %372 = vmatprep.subr.mxu0 0.0
        %373 = vmatpush1.msra.mxu0 0.0
        %374 = vmatprep.subr.mxu0 0.0
        %375 = vmatpush1.msra.mxu0 0.0
        %376 = vmatprep.subr.mxu0 0.0
        %377 = vmatpush1.msra.mxu0 0.0
        %378 = vmatprep.subr.mxu0 0.0
        %379 = vmatpush1.msra.mxu0 0.0
        %380 = vmatprep.subr.mxu0 0.0
        %381 = vmatpush1.msra.mxu0 0.0
        %382 = vmatprep.subr.mxu0 0.0
        %383 = vmatpush1.msra.mxu0 0.0
        %384 = vmatprep.subr.mxu0 0.0
        %385 = vmatpush1.msra.mxu0 0.0
        %386 = vmatprep.subr.mxu0 0.0
        %387 = vmatpush1.msra.mxu0 0.0
        %388 = vmatprep.subr.mxu0 0.0
        %389 = vmatpush1.msra.mxu0 0.0
        %390 = vmatprep.subr.mxu0 0.0
        %391 = vmatpush1.msra.mxu0 0.0
        %392 = vmatprep.subr.mxu0 0.0
        %393 = vmatpush1.msra.mxu0 0.0
        %394 = vmatprep.subr.mxu0 0.0
        %395 = vmatpush1.msra.mxu0 0.0
        %396 = vmatprep.subr.mxu0 0.0
        %397 = vmatpush1.msra.mxu0 0.0
        %398 = vmatprep.subr.mxu0 0.0
        %399 = vmatpush1.msra.mxu0 0.0
        %400 = vmatprep.subr.mxu0 0.0
        %401 = vmatpush1.msra.mxu0 %v289
        %402 = vmatprep.subr.mxu0 0.0
        %403 = vmatpush2.msra.mxu0 0.0
        %404 = vmatprep.subr.mxu0 0.0
        %405 = vmatpush2.msra.mxu0 0.0
        %406 = vmatprep.subr.mxu0 0.0
        %407 = vmatpush2.msra.mxu0 0.0
        %408 = vmatprep.subr.mxu0 0.0
        %409 = vmatpush2.msra.mxu0 0.0
        %410 = vmatprep.subr.mxu0 0.0
        %411 = vmatpush2.msra.mxu0 0.0
        %412 = vmatprep.subr.mxu0 0.0
        %413 = vmatpush2.msra.mxu0 0.0
        %414 = vmatprep.subr.mxu0 0.0
        %415 = vmatpush2.msra.mxu0 0.0
        %416 = vmatprep.subr.mxu0 0.0
        %417 = vmatpush2.msra.mxu0 0.0
        %418 = vmatprep.subr.mxu0 0.0
        %419 = vmatpush2.msra.mxu0 0.0
        %420 = vmatprep.subr.mxu0 0.0
        %421 = vmatpush2.msra.mxu0 0.0
        %422 = vmatprep.subr.mxu0 0.0
        %423 = vmatpush2.msra.mxu0 0.0
        %424 = vmatprep.subr.mxu0 0.0
        %425 = vmatpush2.msra.mxu0 0.0
        %426 = vmatprep.subr.mxu0 0.0
        %427 = vmatpush2.msra.mxu0 0.0
        %428 = vmatprep.subr.mxu0 0.0
        %429 = vmatpush2.msra.mxu0 0.0
        %430 = vmatprep.subr.mxu0 0.0
        %431 = vmatpush2.msra.mxu0 0.0
        %432 = vmatprep.subr.mxu0 0.0
        %433 = vmatpush2.msra.mxu0 0.0
        %434 = vmatprep.mubr.f32.mxu0 0.0
        %435 = vmatmul.mubr.f32.gmra.mxu0 %v323
        %v436 = vpop.f32.mrf.mxu0
        %v437 = vadd.f32 0.0, %v436
        %v438 = vpop.f32.mrf.mxu0
        %439 = vmatprep.mubr.f32.mxu0 0.0
        %440 = vmatmul.mubr.f32.gmra.mxu0 %v326
        %v441 = vpop.f32.mrf.mxu0
        %v442 = vadd.f32 0.0, %v441
        %v443 = vpop.f32.mrf.mxu0
        %444 = vmatprep.mubr.f32.mxu0 0.0
        %445 = vmatmul.mubr.f32.gmra.mxu0 %v329
        %v446 = vpop.f32.mrf.mxu0
        %v447 = vadd.f32 0.0, %v446
        %v448 = vpop.f32.mrf.mxu0
        %449 = vmatprep.mubr.f32.mxu0 0.0
        %450 = vmatmul.mubr.f32.gmra.mxu0 %v332
        %v451 = vpop.f32.mrf.mxu0
        %v452 = vadd.f32 0.0, %v451
        %v453 = vpop.f32.mrf.mxu0
        %454 = vmatprep.mubr.f32.mxu0 0.0
        %455 = vmatmul.mubr.f32.gmra.mxu0 %v335
        %v456 = vpop.f32.mrf.mxu0
        %v457 = vadd.f32 0.0, %v456
        %v458 = vpop.f32.mrf.mxu0
        %459 = vmatprep.mubr.f32.mxu0 0.0
        %460 = vmatmul.mubr.f32.gmra.mxu0 %v338
        %v461 = vpop.f32.mrf.mxu0
        %v462 = vadd.f32 0.0, %v461
        %v463 = vpop.f32.mrf.mxu0
        %464 = vmatprep.mubr.f32.mxu0 0.0
        %465 = vmatmul.mubr.f32.gmra.mxu0 %v341
        %v466 = vpop.f32.mrf.mxu0
        %v467 = vadd.f32 0.0, %v466
        %v468 = vpop.f32.mrf.mxu0
        %469 = vmatprep.mubr.f32.mxu0 0.0
        %470 = vmatmul.mubr.f32.gmra.mxu0 %v344
        %v471 = vpop.f32.mrf.mxu0
        %v472 = vadd.f32 0.0, %v471
        %v473 = vpop.f32.mrf.mxu0
        %474 = vmatprep.mubr.f32.mxu0 0.0
        %475 = vmatmul.mubr.f32.gmra.mxu0 %v347
        %v476 = vpop.f32.mrf.mxu0
        %v477 = vadd.f32 0.0, %v476
        %v478 = vpop.f32.mrf.mxu0
        %479 = vmatprep.mubr.f32.mxu0 0.0
        %480 = vmatmul.mubr.f32.gmra.mxu0 %v350
        %v481 = vpop.f32.mrf.mxu0
        %v482 = vadd.f32 0.0, %v481
        %v483 = vpop.f32.mrf.mxu0
        %484 = vmatprep.mubr.f32.mxu0 0.0
        %485 = vmatmul.mubr.f32.gmra.mxu0 %v353
        %v486 = vpop.f32.mrf.mxu0
        %v487 = vadd.f32 0.0, %v486
        %v488 = vpop.f32.mrf.mxu0
        %489 = vmatprep.mubr.f32.mxu0 0.0
        %490 = vmatmul.mubr.f32.gmra.mxu0 %v356
        %v491 = vpop.f32.mrf.mxu0
        %v492 = vadd.f32 0.0, %v491
        %v493 = vpop.f32.mrf.mxu0
        %494 = vmatprep.mubr.f32.mxu0 0.0
        %495 = vmatmul.mubr.f32.gmra.mxu0 %v359
        %v496 = vpop.f32.mrf.mxu0
        %v497 = vadd.f32 0.0, %v496
        %v498 = vpop.f32.mrf.mxu0
        %499 = vmatprep.mubr.f32.mxu0 0.0
        %500 = vmatmul.mubr.f32.gmra.mxu0 %v362
        %v501 = vpop.f32.mrf.mxu0
        %v502 = vadd.f32 0.0, %v501
        %v503 = vpop.f32.mrf.mxu0
        %504 = vmatprep.mubr.f32.mxu0 0.0
        %505 = vmatmul.mubr.f32.gmra.mxu0 %v365
        %v506 = vpop.f32.mrf.mxu0
        %v507 = vadd.f32 0.0, %v506
        %v508 = vpop.f32.mrf.mxu0
        %509 = vmatprep.mubr.f32.mxu0 0.0
        %510 = vmatmul.mubr.f32.gmra.mxu0 %v368
        %v511 = vpop.f32.mrf.mxu0
        %v512 = vadd.f32 0.0, %v511
        %v513 = vpop.f32.mrf.mxu0
        %514 = vdwg.mxu0
        %v515 = vlaneseq
        %v516 = vand.u32 %v515, 127
        %vm517 = vcmp.lt.s32.totalorder %v516, 32
        %v518 = vsel %vm517, 1, 0
        %vm519 = vcmp.eq.s32.totalorder %v518, 1
        %v520 = vsel %vm519, %v437, -1e+09
        %v521 = vsel %vm519, %v442, -1e+09
        %v522 = vsel %vm519, %v447, -1e+09
        %v523 = vsel %vm519, %v452, -1e+09
        %v524 = vsel %vm519, %v457, -1e+09
        %v525 = vsel %vm519, %v462, -1e+09
        %v526 = vsel %vm519, %v467, -1e+09
        %v527 = vsel %vm519, %v472, -1e+09
        %v528 = vsel %vm519, %v477, -1e+09
        %v529 = vsel %vm519, %v482, -1e+09
        %v530 = vsel %vm519, %v487, -1e+09
        %v531 = vsel %vm519, %v492, -1e+09
        %v532 = vsel %vm519, %v497, -1e+09
        %v533 = vsel %vm519, %v502, -1e+09
        %v534 = vsel %vm519, %v507, -1e+09
        %v535 = vsel %vm519, %v512, -1e+09
        %536 = vmax.xlane.f32.xlu0 %v520
        %v537 = vpop.xlane.xlu0 %536
        %538 = vmax.xlane.f32.xlu0 %v521
        %v539 = vpop.xlane.xlu0 %538
        %540 = vmax.xlane.f32.xlu0 %v522
        %v541 = vpop.xlane.xlu0 %540
        %542 = vmax.xlane.f32.xlu0 %v523
        %v543 = vpop.xlane.xlu0 %542
        %544 = vmax.xlane.f32.xlu0 %v524
        %v545 = vpop.xlane.xlu0 %544
        %546 = vmax.xlane.f32.xlu0 %v525
        %v547 = vpop.xlane.xlu0 %546
        %548 = vmax.xlane.f32.xlu0 %v526
        %v549 = vpop.xlane.xlu0 %548
        %550 = vmax.xlane.f32.xlu0 %v527
        %v551 = vpop.xlane.xlu0 %550
        %552 = vmax.xlane.f32.xlu0 %v528
        %v553 = vpop.xlane.xlu0 %552
        %554 = vmax.xlane.f32.xlu0 %v529
        %v555 = vpop.xlane.xlu0 %554
        %556 = vmax.xlane.f32.xlu0 %v530
        %v557 = vpop.xlane.xlu0 %556
        %558 = vmax.xlane.f32.xlu0 %v531
        %v559 = vpop.xlane.xlu0 %558
        %560 = vmax.xlane.f32.xlu0 %v532
        %v561 = vpop.xlane.xlu0 %560
        %562 = vmax.xlane.f32.xlu0 %v533
        %v563 = vpop.xlane.xlu0 %562
        %564 = vmax.xlane.f32.xlu0 %v534
        %v565 = vpop.xlane.xlu0 %564
        %566 = vmax.xlane.f32.xlu0 %v535
        %v567 = vpop.xlane.xlu0 %566
        %v568 = vsub.f32 %v520, %v537
        %v569 = vsub.f32 %v521, %v539
        %v570 = vsub.f32 %v522, %v541
        %v571 = vsub.f32 %v523, %v543
        %v572 = vsub.f32 %v524, %v545
        %v573 = vsub.f32 %v525, %v547
        %v574 = vsub.f32 %v526, %v549
        %v575 = vsub.f32 %v527, %v551
        %v576 = vsub.f32 %v528, %v553
        %v577 = vsub.f32 %v529, %v555
        %v578 = vsub.f32 %v530, %v557
        %v579 = vsub.f32 %v531, %v559
        %v580 = vsub.f32 %v532, %v561
        %v581 = vsub.f32 %v533, %v563
        %v582 = vsub.f32 %v534, %v565
        %v583 = vsub.f32 %v535, %v567
        %v584 = vmul.f32 %v568, 1.442695
        %v585 = vpow.pop %v584
        %v586 = vmul.f32 %v569, 1.442695
        %v587 = vpow.pop %v586
        %v588 = vmul.f32 %v570, 1.442695
        %v589 = vpow.pop %v588
        %v590 = vmul.f32 %v571, 1.442695
        %v591 = vpow.pop %v590
        %v592 = vmul.f32 %v572, 1.442695
        %v593 = vpow.pop %v592
        %v594 = vmul.f32 %v573, 1.442695
        %v595 = vpow.pop %v594
        %v596 = vmul.f32 %v574, 1.442695
        %v597 = vpow.pop %v596
        %v598 = vmul.f32 %v575, 1.442695
        %v599 = vpow.pop %v598
        %v600 = vmul.f32 %v576, 1.442695
        %v601 = vpow.pop %v600
        %v602 = vmul.f32 %v577, 1.442695
        %v603 = vpow.pop %v602
        %v604 = vmul.f32 %v578, 1.442695
        %v605 = vpow.pop %v604
        %v606 = vmul.f32 %v579, 1.442695
        %v607 = vpow.pop %v606
        %v608 = vmul.f32 %v580, 1.442695
        %v609 = vpow.pop %v608
        %v610 = vmul.f32 %v581, 1.442695
        %v611 = vpow.pop %v610
        %v612 = vmul.f32 %v582, 1.442695
        %v613 = vpow.pop %v612
        %v614 = vmul.f32 %v583, 1.442695
        %v615 = vpow.pop %v614
        %616 = vadd.xlane.f32.xlu0 %v585
        %v617 = vpop.xlane.xlu0 %616
        %618 = vadd.xlane.f32.xlu0 %v587
        %v619 = vpop.xlane.xlu0 %618
        %620 = vadd.xlane.f32.xlu0 %v589
        %v621 = vpop.xlane.xlu0 %620
        %622 = vadd.xlane.f32.xlu0 %v591
        %v623 = vpop.xlane.xlu0 %622
        %624 = vadd.xlane.f32.xlu0 %v593
        %v625 = vpop.xlane.xlu0 %624
        %626 = vadd.xlane.f32.xlu0 %v595
        %v627 = vpop.xlane.xlu0 %626
        %628 = vadd.xlane.f32.xlu0 %v597
        %v629 = vpop.xlane.xlu0 %628
        %630 = vadd.xlane.f32.xlu0 %v599
        %v631 = vpop.xlane.xlu0 %630
        %632 = vadd.xlane.f32.xlu0 %v601
        %v633 = vpop.xlane.xlu0 %632
        %634 = vadd.xlane.f32.xlu0 %v603
        %v635 = vpop.xlane.xlu0 %634
        %636 = vadd.xlane.f32.xlu0 %v605
        %v637 = vpop.xlane.xlu0 %636
        %638 = vadd.xlane.f32.xlu0 %v607
        %v639 = vpop.xlane.xlu0 %638
        %640 = vadd.xlane.f32.xlu0 %v609
        %v641 = vpop.xlane.xlu0 %640
        %642 = vadd.xlane.f32.xlu0 %v611
        %v643 = vpop.xlane.xlu0 %642
        %644 = vadd.xlane.f32.xlu0 %v613
        %v645 = vpop.xlane.xlu0 %644
        %646 = vadd.xlane.f32.xlu0 %v615
        %v647 = vpop.xlane.xlu0 %646
        %v648 = vrcp.pop %v617
        %v649 = vmul.f32 %v585, %v648
        %v650 = vrcp.pop %v619
        %v651 = vmul.f32 %v587, %v650
        %v652 = vrcp.pop %v621
        %v653 = vmul.f32 %v589, %v652
        %v654 = vrcp.pop %v623
        %v655 = vmul.f32 %v591, %v654
        %v656 = vrcp.pop %v625
        %v657 = vmul.f32 %v593, %v656
        %v658 = vrcp.pop %v627
        %v659 = vmul.f32 %v595, %v658
        %v660 = vrcp.pop %v629
        %v661 = vmul.f32 %v597, %v660
        %v662 = vrcp.pop %v631
        %v663 = vmul.f32 %v599, %v662
        %v664 = vrcp.pop %v633
        %v665 = vmul.f32 %v601, %v664
        %v666 = vrcp.pop %v635
        %v667 = vmul.f32 %v603, %v666
        %v668 = vrcp.pop %v637
        %v669 = vmul.f32 %v605, %v668
        %v670 = vrcp.pop %v639
        %v671 = vmul.f32 %v607, %v670
        %v672 = vrcp.pop %v641
        %v673 = vmul.f32 %v609, %v672
        %v674 = vrcp.pop %v643
        %v675 = vmul.f32 %v611, %v674
        %v676 = vrcp.pop %v645
        %v677 = vmul.f32 %v613, %v676
        %v678 = vrcp.pop %v647
        %v679 = vmul.f32 %v615, %v678
        %680 = vmatprep.subr.mxu0 0.0
        %681 = vmatpush1.xpose.msra.mxu0 %v679
        %682 = vmatprep.subr.mxu0 0.0
        %683 = vmatpush1.xpose.msra.mxu0 %v677
        %684 = vmatprep.subr.mxu0 0.0
        %685 = vmatpush1.xpose.msra.mxu0 %v675
        %686 = vmatprep.subr.mxu0 0.0
        %687 = vmatpush1.xpose.msra.mxu0 %v673
        %688 = vmatprep.subr.mxu0 0.0
        %689 = vmatpush1.xpose.msra.mxu0 %v671
        %690 = vmatprep.subr.mxu0 0.0
        %691 = vmatpush1.xpose.msra.mxu0 %v669
        %692 = vmatprep.subr.mxu0 0.0
        %693 = vmatpush1.xpose.msra.mxu0 %v667
        %694 = vmatprep.subr.mxu0 0.0
        %695 = vmatpush1.xpose.msra.mxu0 %v665
        %696 = vmatprep.subr.mxu0 0.0
        %697 = vmatpush1.xpose.msra.mxu0 %v663
        %698 = vmatprep.subr.mxu0 0.0
        %699 = vmatpush1.xpose.msra.mxu0 %v661
        %700 = vmatprep.subr.mxu0 0.0
        %701 = vmatpush1.xpose.msra.mxu0 %v659
        %702 = vmatprep.subr.mxu0 0.0
        %703 = vmatpush1.xpose.msra.mxu0 %v657
        %704 = vmatprep.subr.mxu0 0.0
        %705 = vmatpush1.xpose.msra.mxu0 %v655
        %706 = vmatprep.subr.mxu0 0.0
        %707 = vmatpush1.xpose.msra.mxu0 %v653
        %708 = vmatprep.subr.mxu0 0.0
        %709 = vmatpush1.xpose.msra.mxu0 %v651
        %710 = vmatprep.subr.mxu0 0.0
        %711 = vmatpush1.xpose.msra.mxu0 %v649
        %712 = vmatprep.subr.mxu0 0.0
        %713 = vmatpush2.xpose.msra.mxu0 0.0
        %714 = vmatprep.subr.mxu0 0.0
        %715 = vmatpush2.xpose.msra.mxu0 0.0
        %716 = vmatprep.subr.mxu0 0.0
        %717 = vmatpush2.xpose.msra.mxu0 0.0
        %718 = vmatprep.subr.mxu0 0.0
        %719 = vmatpush2.xpose.msra.mxu0 0.0
        %720 = vmatprep.subr.mxu0 0.0
        %721 = vmatpush2.xpose.msra.mxu0 0.0
        %722 = vmatprep.subr.mxu0 0.0
        %723 = vmatpush2.xpose.msra.mxu0 0.0
        %724 = vmatprep.subr.mxu0 0.0
        %725 = vmatpush2.xpose.msra.mxu0 0.0
        %726 = vmatprep.subr.mxu0 0.0
        %727 = vmatpush2.xpose.msra.mxu0 0.0
        %728 = vmatprep.subr.mxu0 0.0
        %729 = vmatpush2.xpose.msra.mxu0 0.0
        %730 = vmatprep.subr.mxu0 0.0
        %731 = vmatpush2.xpose.msra.mxu0 0.0
        %732 = vmatprep.subr.mxu0 0.0
        %733 = vmatpush2.xpose.msra.mxu0 0.0
        %734 = vmatprep.subr.mxu0 0.0
        %735 = vmatpush2.xpose.msra.mxu0 0.0
        %736 = vmatprep.subr.mxu0 0.0
        %737 = vmatpush2.xpose.msra.mxu0 0.0
        %738 = vmatprep.subr.mxu0 0.0
        %739 = vmatpush2.xpose.msra.mxu0 0.0
        %740 = vmatprep.subr.mxu0 0.0
        %741 = vmatpush2.xpose.msra.mxu0 0.0
        %742 = vmatprep.subr.mxu0 0.0
        %743 = vmatpush2.xpose.msra.mxu0 0.0
        %744 = vmatprep.mubr.f32.mxu0 0.0
        %745 = vmatmul.mubr.f32.gmra.mxu0 %v286
        %v746 = vpop.f32.mrf.mxu0
        %v747 = vadd.f32 0.0, %v746
        %v748 = vpop.f32.mrf.mxu0
        %749 = vdwg.mxu0
        %750 = vst [vmem:[%s131] sm:$0xff] %v747
        %s751 = sand.u32 %s52, 1
        %s752 = scalar_lea.sflag [#allocation4], %s751
        %s753 = sand.u32 %s52, 1
        %s754 = smul.addr %s753, 8
        %s755 = scalar_lea.vmem [#allocation5], %s754
        // Predicated region
        $region29: #{tpu_custom_call.1} parent=23 // pred_check
          %p756 = pneg %p62
        $region30: #{tpu_custom_call.1} parent=23 // pred_check_branch
          %758 = sbr.rel (%p756) target = $region32
        $region31: #{tpu_custom_call.1} parent=23 // pred_region
          %s760 = ssub.s32 128, 128
          %761 = vsyncadd %s752, %s760
          %s762 = smul.addr %s18, 128
          %s763 = scalar_lea.hbm %s1, %s762
          %s765 = sshll.u32 %s755, 4
          %s766 = int_to_ptr.vmem [resolvable:$true] %s765
          %768 = dma.vmem_to_hbm [thread:$0]  %s766, 128, %s763, %s752
        $region32: #{tpu_custom_call.1} parent=23 // pred_fallthru
          _
      $region24: #{tpu_custom_call.1} parent=5 // pred_fallthru
        _
      %p769 = scmp.le.s32.totalorder 2, %s13
      // Predicated region
      $region33: #{tpu_custom_call.1} parent=5 // pred_check
        %p770 = pneg %p769
      $region34: #{tpu_custom_call.1} parent=5 // pred_check_branch
        %772 = sbr.rel (%p770) target = $region36
      $region35: #{tpu_custom_call.1} parent=5 // pred_region
        %s773 = ssub.s32 %s13, 2
        // Predicated region
        $region37: #{tpu_custom_call.1} parent=35 // pred_check
          %p774 = pneg %p68
        $region38: #{tpu_custom_call.1} parent=35 // pred_check_branch
          %776 = sbr.rel (%p774) target = $region40
        $region39: #{tpu_custom_call.1} parent=35 // pred_region
          %s777 = sand.u32 %s53, 1
          %s778 = scalar_lea.sflag [#allocation4], %s777
          %s779 = sand.u32 %s53, 1
          %s780 = smul.addr %s779, 8
          %s781 = scalar_lea.vmem [#allocation5], %s780
          %782 = dma.done %s778, 128
        $region40: #{tpu_custom_call.1} parent=35 // pred_fallthru
          _
      $region36: #{tpu_custom_call.1} parent=5 // pred_fallthru
        _
    $region6: #{tpu_custom_call.1} parent=1 // loop_footer
      %s17 = sadd.s32 1, %s13
    $region7: #{tpu_custom_call.1} parent=1 // loop_footer_branch
      %12 = sbr.rel target = $region3
    $region8: #{tpu_custom_call.1} parent=1 // loop_exit
      _
    %783 = vsyncpa [#allocation3], 1
    %s784 = scalar_lea.sflag [#allocation3], 1
    %785 = vsyncpa %s784, 1
    %786 = vsyncpa [#allocation4], 1
    %s787 = scalar_lea.sflag [#allocation4], 1
    %788 = vsyncpa %s787, 1

</llo_original>
